<compile_context>
chip_gen: v6e
topology: v6e:2x2x1
jax: 0.10.0
libtpu: 0.0.40
codegen_flags: <defaults>
</compile_context>

<pallas_src>
import functools

import jax
import jax.numpy as jnp
import numpy as np
from jax.experimental import pallas as pl
from jax.experimental.pallas import tpu as pltpu


_VMEM_TILE_BUDGET = 24 * 1024 * 1024   # per-step working-set target (<< 64 MiB on v7x)


def _round_up(n, m):
    return ((n + m - 1) // m) * m


def _instance_norm(x, seq_len, full_len):
    """Normalize the first `seq_len` columns of the last axis.

    Matches torch: mean / unbiased std over x[..., :seq_len]; sigma < 1e-6 is
    clamped to 1.0; the remaining (feature) columns are left untouched.
    Returns (normalized_x, mu, sigma) with mu/sigma shaped like x[..., :1].
    """
    n = jnp.float32(seq_len)
    if seq_len == full_len:
        mu = jnp.sum(x, axis=-1, keepdims=True) / n
        centered = x - mu
    else:
        col = jax.lax.broadcasted_iota(jnp.int32, x.shape, x.ndim - 1)
        seq_mask = col < seq_len
        xs = jnp.where(seq_mask, x, 0.0)
        mu = jnp.sum(xs, axis=-1, keepdims=True) / n
        centered = jnp.where(seq_mask, x - mu, 0.0)
    # torch.std is unbiased (N-1); guard seq_len == 1 (torch would produce NaN).
    denom = jnp.maximum(n - 1.0, 1.0)
    var = jnp.sum(centered * centered, axis=-1, keepdims=True) / denom
    sigma = jnp.sqrt(var)
    sigma = jnp.where(sigma < 1e-6, 1.0, sigma)          # torch clamp semantics
    inv_sigma = pl.reciprocal(sigma, approx=True)        # EUP slot, ~free
    if seq_len == full_len:
        h = centered * inv_sigma
    else:
        h = jnp.where(seq_mask, (x - mu) * inv_sigma, x)
    return h, mu, sigma


def _shared_kernel(x_ref, w_ref, b_ref, o_ref, *, seq_len, is_normal):
    """One grid step = TM flattened (batch, channel) rows.

    x_ref: (TM, L)   input rows
    w_ref: (L, Pp)   shared decoder weight (pre-transposed, P padded to 128)
    b_ref: (1, Pp)   shared decoder bias
    o_ref: (TM, Pp)  output rows (lane-dense)
    """
    x = x_ref[...]
    L = x.shape[-1]
    if is_normal:
        h, mu, sigma = _instance_norm(x, seq_len, L)
    else:
        h = x
    y = jnp.dot(h, w_ref[...], preferred_element_type=jnp.float32)
    y = y + b_ref[...]
    if is_normal:
        y = y * sigma + mu
    o_ref[...] = y.astype(o_ref.dtype)


def _individual_kernel(x_ref, w_ref, b_ref, o_ref, *, seq_len, is_normal):
    """One grid step = (TC channels) x (TB batch rows).

    x_ref: (TC, TB, L)   input slab (channel-major)
    w_ref: (TC, L, Pp)   per-channel decoder weights (pre-transposed)
    b_ref: (TC, 1, Pp)   per-channel decoder biases
    o_ref: (TC, TB, Pp)  output slab (lane-dense)
    """
    x = x_ref[...]
    L = x.shape[-1]
    if is_normal:
        h, mu, sigma = _instance_norm(x, seq_len, L)
    else:
        h = x
    y = jnp.einsum("cbl,clp->cbp", h, w_ref[...],
                   preferred_element_type=jnp.float32)
    y = y + b_ref[...]                              # bias broadcasts over TB
    if is_normal:
        y = y * sigma + mu
    o_ref[...] = y.astype(o_ref.dtype)


def linear_forward(x, weight, bias, *, seq_len, is_normal,
                   multidim_handle="individual"):
    """x: [B, C, L]  (L = seq_len + feat_dim).
       'individual': weight [C, P, L], bias [C, P]
       'share'     : weight [P, L],    bias [P]
       Returns y: [B, C, P]."""
    assert multidim_handle in ("individual", "share")
    x = x.astype(jnp.float32)
    B, C, L = x.shape

    if multidim_handle == "share":
        P = weight.shape[0]
        Pp = _round_up(P, 128)
        w_t = jnp.transpose(weight)                 # [L, P]
        b_t = bias[None, :]                         # [1, P]
        if Pp != P:
            w_t = jnp.pad(w_t, ((0, 0), (0, Pp - P)))
            b_t = jnp.pad(b_t, ((0, 0), (0, Pp - P)))

        M = B * C
        x2 = x.reshape(M, L)                        # free reshape (contiguous)

        # Rows per step: lane-dense output, double-buffered x/o under budget.
        per_row = 4 * (L + Pp)
        tm = max(8, min((_VMEM_TILE_BUDGET // (2 * per_row)) // 8 * 8,
                        _round_up(M, 8)))
        # Keep >= 2 grid steps when possible so both v7x cores get a shard.
        if M > 8 and tm >= _round_up(M, 8):
            tm = max(8, _round_up(pl.cdiv(M, 2), 8))
        Mp = _round_up(M, tm)
        if Mp != M:
            x2 = jnp.pad(x2, ((0, Mp - M), (0, 0)))

        tile_bytes = 4 * (tm * L + L * Pp + Pp + tm * Pp)
        vmem_limit = int(min(max(6 * tile_bytes, 32 << 20), 56 << 20))

        kernel = functools.partial(_shared_kernel, seq_len=seq_len,
                                   is_normal=is_normal)
        y2 = pl.pallas_call(
            kernel,
            out_shape=jax.ShapeDtypeStruct((Mp, Pp), x.dtype),
            grid_spec=pltpu.PrefetchScalarGridSpec(
                num_scalar_prefetch=0,
                grid=(Mp // tm,),
                in_specs=[
                    pl.BlockSpec((tm, L), lambda i: (i, 0)),
                    pl.BlockSpec((L, Pp), lambda i: (0, 0)),   # resident weight
                    pl.BlockSpec((1, Pp), lambda i: (0, 0)),   # resident bias
                ],
                out_specs=pl.BlockSpec((tm, Pp), lambda i: (i, 0)),
            ),
            compiler_params=pltpu.CompilerParams(
                dimension_semantics=("parallel",),
                vmem_limit_bytes=vmem_limit,
            ),
        )(x2, w_t, b_t)
        return y2[:M, :P].reshape(B, C, P)

    # ---- 'individual' -------------------------------------------------------
    P = weight.shape[1]
    Pp = _round_up(P, 128)
    w_t = jnp.transpose(weight, (0, 2, 1))          # [C, L, P] (MXU-friendly)
    b_t = bias[:, None, :]                          # [C, 1, P]
    if Pp != P:
        w_t = jnp.pad(w_t, ((0, 0), (0, 0), (0, Pp - P)))
        b_t = jnp.pad(b_t, ((0, 0), (0, 0), (0, Pp - P)))

    x_cm = jnp.transpose(x, (1, 0, 2))              # [C, B, L] channel-major

    # Fuse channels per step (amortize ~600-cycle step overhead) but keep
    # >= 2 steps over the channel axis when C >= 2 (megacore sharding).
    tc = max(1, min(8, pl.cdiv(C, 2)))
    Cp = _round_up(C, tc)
    if Cp != C:
        x_cm = jnp.pad(x_cm, ((0, Cp - C), (0, 0), (0, 0)))
        w_t = jnp.pad(w_t, ((0, Cp - C), (0, 0), (0, 0)))
        b_t = jnp.pad(b_t, ((0, Cp - C), (0, 0), (0, 0)))

    # Batch rows per step.
    per_row = 4 * tc * (L + Pp)
    if B <= 8 or 2 * B * per_row <= _VMEM_TILE_BUDGET:
        tb = B
    else:
        tb = int(max(8, min((_VMEM_TILE_BUDGET // (2 * per_row)) // 8 * 8, B)))
    Bp = _round_up(B, tb)
    if Bp != B:
        x_cm = jnp.pad(x_cm, ((0, 0), (0, Bp - B), (0, 0)))

    tile_bytes = 4 * (tc * tb * L + tc * L * Pp + tc * Pp + tc * tb * Pp)
    vmem_limit = int(min(max(6 * tile_bytes, 32 << 20), 56 << 20))

    kernel = functools.partial(_individual_kernel, seq_len=seq_len,
                               is_normal=is_normal)
    y_cm = pl.pallas_call(
        kernel,
        out_shape=jax.ShapeDtypeStruct((Cp, Bp, Pp), x.dtype),
        grid_spec=pltpu.PrefetchScalarGridSpec(
            num_scalar_prefetch=0,
            grid=(Cp // tc, Bp // tb),              # batch innermost -> weight tile resident
            in_specs=[
                pl.BlockSpec((tc, tb, L), lambda ci, bi: (ci, bi, 0)),
                pl.BlockSpec((tc, L, Pp), lambda ci, bi: (ci, 0, 0)),
                pl.BlockSpec((tc, 1, Pp), lambda ci, bi: (ci, 0, 0)),
            ],
            out_specs=pl.BlockSpec((tc, tb, Pp), lambda ci, bi: (ci, bi, 0)),
        ),
        compiler_params=pltpu.CompilerParams(
            dimension_semantics=("parallel", "parallel"),
            vmem_limit_bytes=vmem_limit,
        ),
    )(x_cm, w_t, b_t)
    return jnp.transpose(y_cm[:C, :B, :P], (1, 0, 2))   # [B, C, P]


def make_params(key, seq_dim, seq_feat_len, pred_len, multidim_handle):
    """Deterministic nn.Linear-style init (uniform +-1/sqrt(fan_in))."""
    bound = 1.0 / jnp.sqrt(jnp.float32(seq_feat_len))
    kw, kb = jax.random.split(key)
    if multidim_handle == "individual":
        weight = jax.random.uniform(
            kw, (seq_dim, pred_len, seq_feat_len), jnp.float32, -bound, bound)
        bias = jax.random.uniform(
            kb, (seq_dim, pred_len), jnp.float32, -bound, bound)
    else:  # 'share': a single decoder applied to every channel
        weight = jax.random.uniform(
            kw, (pred_len, seq_feat_len), jnp.float32, -bound, bound)
        bias = jax.random.uniform(kb, (pred_len,), jnp.float32, -bound, bound)
    return weight, bias


def linear_reference(x, weight, bias, *, seq_len, is_normal, multidim_handle):
    """Pure-JAX mirror of the PyTorch module forward (correctness check)."""
    x = x.astype(jnp.float32)
    if is_normal:
        xs = x[:, :, :seq_len]
        mu = jnp.mean(xs, axis=2, keepdims=True)
        sigma = jnp.std(xs, axis=2, keepdims=True, ddof=1)   # torch.std is unbiased
        sigma = jnp.where(sigma < 1e-6, 1.0, sigma)
        x = x.at[:, :, :seq_len].set((xs - mu) / sigma)
    if multidim_handle == "individual":
        y = jnp.einsum("bcl,cpl->bcp", x, weight) + bias[None]
    else:
        y = jnp.einsum("bcl,pl->bcp", x, weight) + bias[None, None, :]
    if is_normal:
        y = y * sigma + mu
    return y


if __name__ == "__main__":
    # Small shapes consistent with the module's forward.
    batch = 2
    seq_dim = 4          # channels / variables
    seq_len = 8          # history length (normalized portion)
    feat_dim = 4         # extra feature columns appended on the last axis
    pred_len = 6         # forecast horizon
    seq_feat_len = seq_len + feat_dim
    is_normal = True

    key = jax.random.PRNGKey(0)
    kx, kp = jax.random.split(key)
    x = jax.random.normal(kx, (batch, seq_dim, seq_feat_len), jnp.float32)

    for handle in ("individual", "share"):
        weight, bias = make_params(kp, seq_dim, seq_feat_len, pred_len, handle)
        y = linear_forward(x, weight, bias, seq_len=seq_len,
                           is_normal=is_normal, multidim_handle=handle)
        jax.block_until_ready(y)
        assert y.shape == (batch, seq_dim, pred_len)
        y_ref = linear_reference(x, weight, bias, seq_len=seq_len,
                                 is_normal=is_normal, multidim_handle=handle)
        np.testing.assert_allclose(np.asarray(y), np.asarray(y_ref),
                                   rtol=2e-2, atol=2e-2)

    print("KERNEL_OK")
</pallas_src>

<mosaic_0001>
module attributes {stable_mosaic.version = 11 : i64} {
  func.func @_individual_kernel(%arg0: i32, %arg1: i32, %arg2: memref<2x2x12xf32, #tpu.memory_space<vmem>>, %arg3: memref<2x12x128xf32, #tpu.memory_space<vmem>>, %arg4: memref<2x1x128xf32, #tpu.memory_space<vmem>>, %arg5: memref<2x2x128xf32, #tpu.memory_space<vmem>>) attributes {dimension_semantics = [#tpu.dimension_semantics<parallel>, #tpu.dimension_semantics<parallel>], iteration_bounds = array<i64: 2, 1>, scalar_prefetch = 0 : i64, scratch_operands = 0 : i64, tpu.core_type = #tpu.core_type<tc>, window_params = [{transform_indices = @transform_0, window_bounds = array<i64: 2, 2, 12>}, {transform_indices = @transform_1, window_bounds = array<i64: 2, 12, 128>}, {transform_indices = @transform_2, window_bounds = array<i64: 2, 1, 128>}, {transform_indices = @transform_3, window_bounds = array<i64: 2, 2, 128>}]} {
    %c0 = arith.constant 0 : index
    %c0_0 = arith.constant 0 : index
    %c0_1 = arith.constant 0 : index
    %0 = vector.load %arg2[%c0, %c0_0, %c0_1] : memref<2x2x12xf32, #tpu.memory_space<vmem>>, vector<2x2x12xf32>
    %1 = tpu.iota {dimensions = array<i32: 2>} : vector<2x2x12xi32>
    %c8_i32 = arith.constant 8 : i32
    %2 = vector.broadcast %c8_i32 : i32 to vector<2x2x12xi32>
    %3 = arith.cmpi slt, %1, %2 : vector<2x2x12xi32>
    %cst = arith.constant 0.000000e+00 : f32
    %4 = vector.broadcast %cst : f32 to vector<2x2x12xf32>
    %5 = arith.select %3, %0, %4 : vector<2x2x12xi1>, vector<2x2x12xf32>
    %cst_2 = arith.constant dense<0.000000e+00> : vector<2x2xf32>
    %6 = vector.multi_reduction <add>, %5, %cst_2 [2] : vector<2x2x12xf32> to vector<2x2xf32>
    %7 = vector.shape_cast %6 : vector<2x2xf32> to vector<2x2x1xf32>
    %cst_3 = arith.constant 8.000000e+00 : f32
    %8 = vector.broadcast %cst_3 : f32 to vector<2x2x1xf32>
    %9 = arith.divf %7, %8 : vector<2x2x1xf32>
    %10 = vector.broadcast %9 : vector<2x2x1xf32> to vector<2x2x12xf32>
    %11 = arith.subf %0, %10 : vector<2x2x12xf32>
    %cst_4 = arith.constant 0.000000e+00 : f32
    %12 = vector.broadcast %cst_4 : f32 to vector<2x2x12xf32>
    %13 = arith.select %3, %11, %12 : vector<2x2x12xi1>, vector<2x2x12xf32>
    %cst_5 = arith.constant 8.000000e+00 : f32
    %cst_6 = arith.constant 1.000000e+00 : f32
    %14 = arith.subf %cst_5, %cst_6 : f32
    %cst_7 = arith.constant 1.000000e+00 : f32
    %15 = arith.maximumf %14, %cst_7 : f32
    %16 = arith.mulf %13, %13 : vector<2x2x12xf32>
    %cst_8 = arith.constant dense<0.000000e+00> : vector<2x2xf32>
    %17 = vector.multi_reduction <add>, %16, %cst_8 [2] : vector<2x2x12xf32> to vector<2x2xf32>
    %18 = vector.shape_cast %17 : vector<2x2xf32> to vector<2x2x1xf32>
    %19 = vector.broadcast %15 : f32 to vector<2x2x1xf32>
    %20 = arith.divf %18, %19 : vector<2x2x1xf32>
    %21 = math.sqrt %20 : vector<2x2x1xf32>
    %cst_9 = arith.constant 9.99999997E-7 : f32
    %22 = vector.broadcast %cst_9 : f32 to vector<2x2x1xf32>
    %23 = arith.cmpf olt, %21, %22 : vector<2x2x1xf32>
    %cst_10 = arith.constant 1.000000e+00 : f32
    %24 = vector.broadcast %cst_10 : f32 to vector<2x2x1xf32>
    %25 = arith.select %23, %24, %21 : vector<2x2x1xi1>, vector<2x2x1xf32>
    %26 = tpu.reciprocal %25 {approx = true} : vector<2x2x1xf32> -> vector<2x2x1xf32>
    %27 = vector.broadcast %9 : vector<2x2x1xf32> to vector<2x2x12xf32>
    %28 = arith.subf %0, %27 : vector<2x2x12xf32>
    %29 = vector.broadcast %26 : vector<2x2x1xf32> to vector<2x2x12xf32>
    %30 = arith.mulf %28, %29 : vector<2x2x12xf32>
    %31 = arith.select %3, %30, %0 : vector<2x2x12xi1>, vector<2x2x12xf32>
    %c0_11 = arith.constant 0 : index
    %c0_12 = arith.constant 0 : index
    %c0_13 = arith.constant 0 : index
    %32 = vector.load %arg3[%c0_11, %c0_12, %c0_13] : memref<2x12x128xf32, #tpu.memory_space<vmem>>, vector<2x12x128xf32>
    "tpu.trace_start"() <{level = 10 : i32, message = "cbl,clp->cbp"}> : () -> ()
    %cst_14 = arith.constant dense<0.000000e+00> : vector<2x2x128xf32>
    %33 = tpu.matmul %31, %32, %cst_14 {dimension_numbers = #tpu.dot_dimension_numbers<[2], [1], [1], [2], [0, 0, 0, 1, 1, 2], [0], [0]>} : vector<2x2x12xf32>, vector<2x12x128xf32>, vector<2x2x128xf32> -> vector<2x2x128xf32>
    "tpu.trace_stop"() : () -> ()
    %c0_15 = arith.constant 0 : index
    %c0_16 = arith.constant 0 : index
    %c0_17 = arith.constant 0 : index
    %34 = vector.load %arg4[%c0_15, %c0_16, %c0_17] : memref<2x1x128xf32, #tpu.memory_space<vmem>>, vector<2x1x128xf32>
    %35 = vector.broadcast %34 : vector<2x1x128xf32> to vector<2x2x128xf32>
    %36 = arith.addf %33, %35 : vector<2x2x128xf32>
    %37 = vector.broadcast %25 : vector<2x2x1xf32> to vector<2x2x128xf32>
    %38 = arith.mulf %36, %37 : vector<2x2x128xf32>
    %39 = vector.broadcast %9 : vector<2x2x1xf32> to vector<2x2x128xf32>
    %40 = arith.addf %38, %39 : vector<2x2x128xf32>
    %c0_18 = arith.constant 0 : index
    %c0_19 = arith.constant 0 : index
    %c0_20 = arith.constant 0 : index
    %41 = vector.load %arg5[%c0_18, %c0_19, %c0_20] : memref<2x2x128xf32, #tpu.memory_space<vmem>>, vector<2x2x128xf32>
    tpu.vector_store %arg5[%c0_18, %c0_19, %c0_20], %40 {strides = array<i32>} : memref<2x2x128xf32, #tpu.memory_space<vmem>>, vector<2x2x128xf32>,
    return
  }
  func.func @transform_0(%arg0: i32, %arg1: i32) -> (i32, i32, i32) {
    %c0_i32 = arith.constant 0 : i32
    %c0_i32_0 = arith.constant 0 : i32
    return %arg0, %arg1, %c0_i32 : i32, i32, i32
  }
  func.func @transform_1(%arg0: i32, %arg1: i32) -> (i32, i32, i32) {
    %c0_i32 = arith.constant 0 : i32
    %c0_i32_0 = arith.constant 0 : i32
    %c0_i32_1 = arith.constant 0 : i32
    return %arg0, %c0_i32, %c0_i32_0 : i32, i32, i32
  }
  func.func @transform_2(%arg0: i32, %arg1: i32) -> (i32, i32, i32) {
    %c0_i32 = arith.constant 0 : i32
    %c0_i32_0 = arith.constant 0 : i32
    %c0_i32_1 = arith.constant 0 : i32
    return %arg0, %c0_i32, %c0_i32_0 : i32, i32, i32
  }
  func.func @transform_3(%arg0: i32, %arg1: i32) -> (i32, i32, i32) {
    %c0_i32 = arith.constant 0 : i32
    %c0_i32_0 = arith.constant 0 : i32
    return %arg0, %arg1, %c0_i32 : i32, i32, i32
  }
}

</mosaic_0001>

<llo_original>
// kernel: tpu_custom_call.1
$region0: #{tpu_custom_call.1}
  #allocation0 [shape = 'u32[]', space=smem, size = 0x4, offset = 0x4, fixed_abs, tag = 'smem constant byte address 0x4 - core index']
  #allocation1 [shape = 'u32[144,128]{1,0:T(1,128)}', space=vmem, size = 0x12000, scoped, tag = 'internal scratch']
  %s0 = inlined_call_operand.vmem [shape: f32[4,2,12], index: 0, kind: input, shape index: {}]
  %s1 = inlined_call_operand.vmem [shape: f32[4,12,128], index: 1, kind: input, shape index: {}]
  %s2 = inlined_call_operand.vmem [shape: f32[4,1,128], index: 2, kind: input, shape index: {}]
  %s3 = inlined_call_operand.hbm [shape: f32[4,2,128], index: 3, kind: output, shape index: {}]
  %s4 = sld [smem:[#allocation0]]
  $region45: #{tpu_custom_call.1} parent=0
    _
  %s6 = ssub.s32 1, %s4
  %s7 = scalar_select 0, %s6, %s4
  $region1: #{tpu_custom_call.1} parent=0
    #allocation2 [shape = 'u8[4096]{0}', space=vmem, size = 0x1000, scoped, tag = 'output window, operand 0']
    #allocation3 [shape = 's32[2]{0}', space=sflag, size = 0x8, scoped, tag = 'scoped memory for tpu_custom_call.1']
    %8 = vsyncpa [#allocation3], 0
    %s9 = scalar_lea.sflag [#allocation3], 1
    %10 = vsyncpa %s9, 0
    loop: start=0, step=1, limit=4
    $region2: #{tpu_custom_call.1} parent=1 // loop_pre_header
      _
    $region3: #{tpu_custom_call.1} parent=1 // loop_header
      %s12 = sphi 0, %s16
      %p13 = scmp.ge.s32.totalorder %s12, 4
      %s19 = sphi 0, %s31
      %s20 = sphi 0, %s27
      %s21 = sphi 0, %s19
      %s22 = sphi 0, %s20
      %s23 = sphi 0, %s21
      %s24 = sphi 0, %s22
      %s36 = sphi 0, %s38
      %s39 = sphi 0, %s36
      %s40 = sphi 0, %s39
      %s56 = sphi 0, %s40
      %s62 = sphi 0, %s64
      %s65 = sphi 0, %s62
      %s66 = sphi 0, %s65
      %s82 = sphi 0, %s66
      %s88 = sphi 0, %s90
      %s91 = sphi 0, %s88
      %s92 = sphi 0, %s91
      %s108 = sphi 0, %s92
      %s116 = sphi 0, %s118
      %s119 = sphi 0, %s116
      %s120 = sphi 0, %s119
      %s136 = sphi 0, %s120
    $region4: #{tpu_custom_call.1} parent=1 // loop_header_branch
      %15 = sbr.rel (%p13) target = $region8
    $region5: #{tpu_custom_call.1} parent=1 // loop_body
      %s17 = ssub.s32 %s12, 1
      %s18 = ssub.s32 %s12, 2
      %s25 = sadd.s32 1, %s20
      %p26 = scmp.ge.s32.totalorder %s25, 1
      %s27 = scalar_select %p26, 0, %s25
      %s28 = sadd.s32 1, %s19
      %s29 = scalar_select %p26, %s28, %s19
      %p30 = scmp.ge.s32.totalorder %s29, 2
      %s31 = scalar_select %p30, 0, %s29
      %s32 = ssub.s32 %s19, %s31
      %s33 = ssub.s32 %s20, %s27
      %s34 = sor.u32 %s32, %s33
      %p35 = scmp.eq.s32.totalorder %s34, 0
      %s37 = sadd.s32 %s36, 1
      %s38 = scalar_select %p35, %s36, %s37
      %p41 = pneg %p35
      %p42 = scmp.eq.s32.totalorder %s12, 1
      %p43 = por %p41, %p42
      %p44 = scmp.ne.s32.totalorder %s36, %s39
      %p45 = scmp.eq.s32.totalorder %s12, 0
      %p46 = por %p44, %p45
      %p47 = scmp.ne.s32.totalorder %s36, %s39
      %p48 = scmp.eq.s32.totalorder %s17, 1
      %p49 = por %p47, %p48
      %p50 = scmp.ne.s32.totalorder %s39, %s40
      %p51 = scmp.eq.s32.totalorder %s17, 0
      %p52 = por %p50, %p51
      %p53 = scmp.ne.s32.totalorder %s39, %s40
      %p54 = scmp.eq.s32.totalorder %s18, 1
      %p55 = por %p53, %p54
      %p57 = scmp.ne.s32.totalorder %s40, %s56
      %p58 = scmp.eq.s32.totalorder %s18, 0
      %p59 = por %p57, %p58
      %s60 = ssub.s32 %s19, %s31
      %p61 = scmp.eq.s32.totalorder %s60, 0
      %s63 = sadd.s32 %s62, 1
      %s64 = scalar_select %p61, %s62, %s63
      %p67 = pneg %p61
      %p68 = scmp.eq.s32.totalorder %s12, 1
      %p69 = por %p67, %p68
      %p70 = scmp.ne.s32.totalorder %s62, %s65
      %p71 = scmp.eq.s32.totalorder %s12, 0
      %p72 = por %p70, %p71
      %p73 = scmp.ne.s32.totalorder %s62, %s65
      %p74 = scmp.eq.s32.totalorder %s17, 1
      %p75 = por %p73, %p74
      %p76 = scmp.ne.s32.totalorder %s65, %s66
      %p77 = scmp.eq.s32.totalorder %s17, 0
      %p78 = por %p76, %p77
      %p79 = scmp.ne.s32.totalorder %s65, %s66
      %p80 = scmp.eq.s32.totalorder %s18, 1
      %p81 = por %p79, %p80
      %p83 = scmp.ne.s32.totalorder %s66, %s82
      %p84 = scmp.eq.s32.totalorder %s18, 0
      %p85 = por %p83, %p84
      %s86 = ssub.s32 %s19, %s31
      %p87 = scmp.eq.s32.totalorder %s86, 0
      %s89 = sadd.s32 %s88, 1
      %s90 = scalar_select %p87, %s88, %s89
      %p93 = pneg %p87
      %p94 = scmp.eq.s32.totalorder %s12, 1
      %p95 = por %p93, %p94
      %p96 = scmp.ne.s32.totalorder %s88, %s91
      %p97 = scmp.eq.s32.totalorder %s12, 0
      %p98 = por %p96, %p97
      %p99 = scmp.ne.s32.totalorder %s88, %s91
      %p100 = scmp.eq.s32.totalorder %s17, 1
      %p101 = por %p99, %p100
      %p102 = scmp.ne.s32.totalorder %s91, %s92
      %p103 = scmp.eq.s32.totalorder %s17, 0
      %p104 = por %p102, %p103
      %p105 = scmp.ne.s32.totalorder %s91, %s92
      %p106 = scmp.eq.s32.totalorder %s18, 1
      %p107 = por %p105, %p106
      %p109 = scmp.ne.s32.totalorder %s92, %s108
      %p110 = scmp.eq.s32.totalorder %s18, 0
      %p111 = por %p109, %p110
      %s112 = ssub.s32 %s19, %s31
      %s113 = ssub.s32 %s20, %s27
      %s114 = sor.u32 %s112, %s113
      %p115 = scmp.eq.s32.totalorder %s114, 0
      %s117 = sadd.s32 %s116, 1
      %s118 = scalar_select %p115, %s116, %s117
      %p121 = pneg %p115
      %p122 = scmp.eq.s32.totalorder %s12, 1
      %p123 = por %p121, %p122
      %p124 = scmp.ne.s32.totalorder %s116, %s119
      %p125 = scmp.eq.s32.totalorder %s12, 0
      %p126 = por %p124, %p125
      %p127 = scmp.ne.s32.totalorder %s116, %s119
      %p128 = scmp.eq.s32.totalorder %s17, 1
      %p129 = por %p127, %p128
      %p130 = scmp.ne.s32.totalorder %s119, %s120
      %p131 = scmp.eq.s32.totalorder %s17, 0
      %p132 = por %p130, %p131
      %p133 = scmp.ne.s32.totalorder %s119, %s120
      %p134 = scmp.eq.s32.totalorder %s18, 1
      %p135 = por %p133, %p134
      %p137 = scmp.ne.s32.totalorder %s120, %s136
      %p138 = scmp.eq.s32.totalorder %s18, 0
      %p139 = por %p137, %p138
      %p140 = scmp.le.s32.totalorder 1, %s12
      %p141 = scmp.lt.s32.totalorder %s12, 3
      %p142 = pnand %p140, %p141
      %p143 = pneg %p142
      // Predicated region
      $region9: #{tpu_custom_call.1} parent=5 // pred_check
        _
      $region10: #{tpu_custom_call.1} parent=5 // pred_check_branch
        %145 = sbr.rel (%p142) target = $region12
      $region11: #{tpu_custom_call.1} parent=5 // pred_region
        %s146 = ssub.s32 %s12, 1
      $region12: #{tpu_custom_call.1} parent=5 // pred_fallthru
        _
      %p147 = scmp.lt.s32.totalorder %s12, 2
      // Predicated region
      $region13: #{tpu_custom_call.1} parent=5 // pred_check
        %p148 = pneg %p147
      $region14: #{tpu_custom_call.1} parent=5 // pred_check_branch
        %150 = sbr.rel (%p148) target = $region16
      $region15: #{tpu_custom_call.1} parent=5 // pred_region
        // Predicated region
        $region17: #{tpu_custom_call.1} parent=15 // pred_check
          %p151 = pneg %p46
        $region18: #{tpu_custom_call.1} parent=15 // pred_check_branch
          %153 = sbr.rel (%p151) target = $region20
        $region19: #{tpu_custom_call.1} parent=15 // pred_region
          %s154 = smul.u32 2, %s19
          %p155 = scmp.lt.s32.totalorder %s154, 3
          %s156 = scalar_select %p155, %s154, 3
          %p157 = scmp.lt.s32.totalorder %s20, 0
          %s158 = scalar_select %p157, %s20, 0
          %s159 = sadd.s32 %s158, %s156
          %s160 = smul.addr %s159, 2
          %s161 = scalar_lea.vmem %s0, %s160
          %s162 = smul.u32 2, %s19
        $region20: #{tpu_custom_call.1} parent=15 // pred_fallthru
          _
        // Predicated region
        $region21: #{tpu_custom_call.1} parent=15 // pred_check
          %p163 = pneg %p72
        $region22: #{tpu_custom_call.1} parent=15 // pred_check_branch
          %165 = sbr.rel (%p163) target = $region24
        $region23: #{tpu_custom_call.1} parent=15 // pred_region
          %s166 = smul.u32 2, %s19
          %p167 = scmp.lt.s32.totalorder %s166, 3
          %s168 = scalar_select %p167, %s166, 3
          %s169 = smul.addr %s168, 2
          %s170 = smul.addr %s169, 8
          %s171 = scalar_lea.vmem %s1, %s170
          %s172 = smul.u32 2, %s19
        $region24: #{tpu_custom_call.1} parent=15 // pred_fallthru
          _
        // Predicated region
        $region25: #{tpu_custom_call.1} parent=15 // pred_check
          %p173 = pneg %p98
        $region26: #{tpu_custom_call.1} parent=15 // pred_check_branch
          %175 = sbr.rel (%p173) target = $region28
        $region27: #{tpu_custom_call.1} parent=15 // pred_region
          %s176 = smul.u32 2, %s19
          %p177 = scmp.lt.s32.totalorder %s176, 3
          %s178 = scalar_select %p177, %s176, 3
          %s179 = scalar_lea.vmem %s2, %s178
          %s180 = smul.u32 2, %s19
        $region28: #{tpu_custom_call.1} parent=15 // pred_fallthru
          _
      $region16: #{tpu_custom_call.1} parent=5 // pred_fallthru
        _
      %p181 = scmp.le.s32.totalorder 1, %s12
      %p182 = scmp.lt.s32.totalorder %s12, 3
      %p183 = pnand %p181, %p182
      %p184 = pneg %p183
      // Predicated region
      $region29: #{tpu_custom_call.1} parent=5 // pred_check
        _
      $region30: #{tpu_custom_call.1} parent=5 // pred_check_branch
        %186 = sbr.rel (%p183) target = $region32
      $region31: #{tpu_custom_call.1} parent=5 // pred_region
        %s187 = ssub.s32 %s12, 1
        %s188 = smul.u32 2, %s21
        %p189 = scmp.lt.s32.totalorder %s188, 3
        %s190 = scalar_select %p189, %s188, 3
        %p191 = scmp.lt.s32.totalorder %s22, 0
        %s192 = scalar_select %p191, %s22, 0
        %s193 = sadd.s32 %s192, %s190
        %s194 = smul.addr %s193, 2
        %s195 = scalar_lea.vmem %s0, %s194
        %p196 = pneg %p52
        %p197 = pneg %p49
        %s198 = smul.u32 2, %s21
        %p199 = scmp.lt.s32.totalorder %s198, 3
        %s200 = scalar_select %p199, %s198, 3
        %s201 = smul.addr %s200, 2
        %s202 = smul.addr %s201, 8
        %s203 = scalar_lea.vmem %s1, %s202
        %p204 = pneg %p78
        %p205 = pneg %p75
        %s206 = smul.u32 2, %s21
        %p207 = scmp.lt.s32.totalorder %s206, 3
        %s208 = scalar_select %p207, %s206, 3
        %s209 = scalar_lea.vmem %s2, %s208
        %p210 = pneg %p104
        %p211 = pneg %p101
        %p212 = pneg %p132
        %p213 = pneg %p129
        %s214 = sand.u32 %s119, 1
        %s215 = scalar_lea.sflag [#allocation3], %s214
        %s216 = sand.u32 %s119, 1
        %s217 = smul.addr %s216, 4
        %s218 = scalar_lea.vmem [#allocation2], %s217
        %s219 = smul.u32 2, %s21
        %p220 = scmp.lt.s32.totalorder %s219, 3
        %s221 = scalar_select %p220, %s219, 3
        %p222 = scmp.lt.s32.totalorder %s22, 0
        %s223 = scalar_select %p222, %s22, 0
        %s224 = sadd.s32 %s223, %s221
        %s225 = smul.addr %s224, 2
        %s226 = scalar_lea.vmem %s0, %s225
        %s227 = smul.u32 2, %s21
        %s228 = smul.u32 2, %s21
        %p229 = scmp.lt.s32.totalorder %s228, 3
        %s230 = scalar_select %p229, %s228, 3
        %s231 = smul.addr %s230, 2
        %s232 = smul.addr %s231, 8
        %s233 = scalar_lea.vmem %s1, %s232
        %s234 = smul.u32 2, %s21
        %s235 = smul.u32 2, %s21
        %p236 = scmp.lt.s32.totalorder %s235, 3
        %s237 = scalar_select %p236, %s235, 3
        %s238 = scalar_lea.vmem %s2, %s237
        %s239 = smul.u32 2, %s21
        %s240 = smul.u32 2, %s21
        %v241 = vld [vmem:[%s226] sm:$0x3]
        %v242 = vld [vmem:[%s226 + $0x2] sm:$0x3]
        %v243 = vlaneseq
        %v244 = vand.u32 %v243, 127
        %vm245 = vcmp.lt.s32.totalorder %v244, 8
        %v246 = vsel %vm245, %v241, 0.0
        %v247 = vsel %vm245, %v242, 0.0
        %vm248 = vcmask 91136
        %v249 = vsel %vm248, %v246, 0.0
        %250 = vadd.xlane.f32.xlu0 %v249
        %v251 = vpop.xlane.xlu0 %250
        %v252 = vsel %vm248, %v247, 0.0
        %253 = vadd.xlane.f32.xlu0 %v252
        %v254 = vpop.xlane.xlu0 %253
        %v255 = vrcp.pop 8.0
        %v256 = vmul.f32 %v251, %v255
        %v257 = vmul.f32 %v254, %v255
        %v258 = vsub.f32 %v241, %v256
        %v259 = vsub.f32 %v242, %v257
        %v260 = vsel %vm245, %v258, 0.0
        %v261 = vsel %vm245, %v259, 0.0
        %v262 = vmul.f32 %v260, %v260
        %v263 = vmul.f32 %v261, %v261
        %v264 = vsel %vm248, %v262, 0.0
        %265 = vadd.xlane.f32.xlu0 %v264
        %v266 = vpop.xlane.xlu0 %265
        %v267 = vsel %vm248, %v263, 0.0
        %268 = vadd.xlane.f32.xlu0 %v267
        %v269 = vpop.xlane.xlu0 %268
        %v270 = vrcp.pop 7.0
        %v271 = vmul.f32 %v266, %v270
        %v272 = vmul.f32 %v269, %v270
        %v273 = vrsqrt.pop %v271
        %v274 = vmul.f32 %v271, %v273
        %vm275 = vcmp.eq.f32.partialorder %v271, inf
        %v276 = vsel %vm275, %v271, %v274
        %vm277 = vcmp.eq.f32.partialorder %v271, 0.0
        %v278 = vand.u32 %v271, 2147483648
        %v279 = vsel %vm277, %v278, %v276
        %v280 = vrsqrt.pop %v272
        %v281 = vmul.f32 %v272, %v280
        %vm282 = vcmp.eq.f32.partialorder %v272, inf
        %v283 = vsel %vm282, %v272, %v281
        %vm284 = vcmp.eq.f32.partialorder %v272, 0.0
        %v285 = vand.u32 %v272, 2147483648
        %v286 = vsel %vm284, %v285, %v283
        %vm287 = vcmp.lt.f32.partialorder %v279, 1e-06
        %vm288 = vcmp.lt.f32.partialorder %v286, 1e-06
        %v289 = vsel %vm287, 1.0, %v279
        %v290 = vsel %vm288, 1.0, %v286
        %v291 = vrcp.pop %v289
        %v292 = vrcp.pop %v290
        %v293 = vmul.f32 %v258, %v291
        %v294 = vmul.f32 %v259, %v292
        %v295 = vsel %vm245, %v293, %v241
        %v296 = vsel %vm245, %v294, %v242
        %v297 = vld [vmem:[%s233] sm:$0xff]
        %v298 = vld [vmem:[%s233 + $0x8] sm:$0xf]
        %v299 = vld [vmem:[%s233 + $0x10] sm:$0xff]
        %v300 = vld [vmem:[%s233 + $0x18] sm:$0xf]
        %v301 = vld [vmem:[%s238] sm:$0x1]
        %v302 = vld [vmem:[%s238 + $0x1] sm:$0x1]
        %v305 = vlaneseq
        %v306 = vshrl.u32 %v305, 7
        %v307 = vsub.s32 0, %v306
        %v308 = vrot.slane %v301, %v307
        %v309 = vlaneseq
        %v310 = vshrl.u32 %v309, 7
        %v311 = vsub.s32 0, %v310
        %v312 = vrot.slane %v302, %v311
        %vm315 = vcmask 97280
        %v317 = vsel %vm315, %v295, 0
        %vm319 = vcmask 1043456
        %v321 = vsel %vm319, %v298, 0
        %323 = vmatprep.subr.mxu0 0.0
        %324 = vmatpush1.msra.mxu0 0.0
        %325 = vmatprep.subr.mxu0 0.0
        %326 = vmatpush1.msra.mxu0 0.0
        %327 = vmatprep.subr.mxu0 0.0
        %328 = vmatpush1.msra.mxu0 0.0
        %329 = vmatprep.subr.mxu0 0.0
        %330 = vmatpush1.msra.mxu0 0.0
        %331 = vmatprep.subr.mxu0 0.0
        %332 = vmatpush1.msra.mxu0 0.0
        %333 = vmatprep.subr.mxu0 0.0
        %334 = vmatpush1.msra.mxu0 0.0
        %335 = vmatprep.subr.mxu0 0.0
        %336 = vmatpush1.msra.mxu0 0.0
        %337 = vmatprep.subr.mxu0 0.0
        %338 = vmatpush1.msra.mxu0 0.0
        %339 = vmatprep.subr.mxu0 0.0
        %340 = vmatpush1.msra.mxu0 0.0
        %341 = vmatprep.subr.mxu0 0.0
        %342 = vmatpush1.msra.mxu0 0.0
        %343 = vmatprep.subr.mxu0 0.0
        %344 = vmatpush1.msra.mxu0 0.0
        %345 = vmatprep.subr.mxu0 0.0
        %346 = vmatpush1.msra.mxu0 0.0
        %347 = vmatprep.subr.mxu0 0.0
        %348 = vmatpush1.msra.mxu0 0.0
        %349 = vmatprep.subr.mxu0 0.0
        %350 = vmatpush1.msra.mxu0 0.0
        %351 = vmatprep.subr.mxu0 0.0
        %352 = vmatpush1.msra.mxu0 %v321
        %353 = vmatprep.subr.mxu0 0.0
        %354 = vmatpush1.msra.mxu0 %v297
        %355 = vmatprep.subr.mxu0 0.0
        %356 = vmatpush2.msra.mxu0 0.0
        %357 = vmatprep.subr.mxu0 0.0
        %358 = vmatpush2.msra.mxu0 0.0
        %359 = vmatprep.subr.mxu0 0.0
        %360 = vmatpush2.msra.mxu0 0.0
        %361 = vmatprep.subr.mxu0 0.0
        %362 = vmatpush2.msra.mxu0 0.0
        %363 = vmatprep.subr.mxu0 0.0
        %364 = vmatpush2.msra.mxu0 0.0
        %365 = vmatprep.subr.mxu0 0.0
        %366 = vmatpush2.msra.mxu0 0.0
        %367 = vmatprep.subr.mxu0 0.0
        %368 = vmatpush2.msra.mxu0 0.0
        %369 = vmatprep.subr.mxu0 0.0
        %370 = vmatpush2.msra.mxu0 0.0
        %371 = vmatprep.subr.mxu0 0.0
        %372 = vmatpush2.msra.mxu0 0.0
        %373 = vmatprep.subr.mxu0 0.0
        %374 = vmatpush2.msra.mxu0 0.0
        %375 = vmatprep.subr.mxu0 0.0
        %376 = vmatpush2.msra.mxu0 0.0
        %377 = vmatprep.subr.mxu0 0.0
        %378 = vmatpush2.msra.mxu0 0.0
        %379 = vmatprep.subr.mxu0 0.0
        %380 = vmatpush2.msra.mxu0 0.0
        %381 = vmatprep.subr.mxu0 0.0
        %382 = vmatpush2.msra.mxu0 0.0
        %383 = vmatprep.subr.mxu0 0.0
        %384 = vmatpush2.msra.mxu0 0.0
        %385 = vmatprep.subr.mxu0 0.0
        %386 = vmatpush2.msra.mxu0 0.0
        %387 = vmatprep.mubr.f32.mxu0 0.0
        %388 = vmatmul.mubr.f32.gmra.mxu0 %v317
        %v389 = vpop.f32.mrf.mxu0
        %v390 = vadd.f32 %v308, %v389
        %v391 = vpop.f32.mrf.mxu0
        %392 = vdwg.mxu0
        %v394 = vsel %vm315, %v296, 0
        %v397 = vsel %vm319, %v300, 0
        %399 = vmatprep.subr.mxu0 0.0
        %400 = vmatpush1.msra.mxu0 0.0
        %401 = vmatprep.subr.mxu0 0.0
        %402 = vmatpush1.msra.mxu0 0.0
        %403 = vmatprep.subr.mxu0 0.0
        %404 = vmatpush1.msra.mxu0 0.0
        %405 = vmatprep.subr.mxu0 0.0
        %406 = vmatpush1.msra.mxu0 0.0
        %407 = vmatprep.subr.mxu0 0.0
        %408 = vmatpush1.msra.mxu0 0.0
        %409 = vmatprep.subr.mxu0 0.0
        %410 = vmatpush1.msra.mxu0 0.0
        %411 = vmatprep.subr.mxu0 0.0
        %412 = vmatpush1.msra.mxu0 0.0
        %413 = vmatprep.subr.mxu0 0.0
        %414 = vmatpush1.msra.mxu0 0.0
        %415 = vmatprep.subr.mxu0 0.0
        %416 = vmatpush1.msra.mxu0 0.0
        %417 = vmatprep.subr.mxu0 0.0
        %418 = vmatpush1.msra.mxu0 0.0
        %419 = vmatprep.subr.mxu0 0.0
        %420 = vmatpush1.msra.mxu0 0.0
        %421 = vmatprep.subr.mxu0 0.0
        %422 = vmatpush1.msra.mxu0 0.0
        %423 = vmatprep.subr.mxu0 0.0
        %424 = vmatpush1.msra.mxu0 0.0
        %425 = vmatprep.subr.mxu0 0.0
        %426 = vmatpush1.msra.mxu0 0.0
        %427 = vmatprep.subr.mxu0 0.0
        %428 = vmatpush1.msra.mxu0 %v397
        %429 = vmatprep.subr.mxu0 0.0
        %430 = vmatpush1.msra.mxu0 %v299
        %431 = vmatprep.subr.mxu0 0.0
        %432 = vmatpush2.msra.mxu0 0.0
        %433 = vmatprep.subr.mxu0 0.0
        %434 = vmatpush2.msra.mxu0 0.0
        %435 = vmatprep.subr.mxu0 0.0
        %436 = vmatpush2.msra.mxu0 0.0
        %437 = vmatprep.subr.mxu0 0.0
        %438 = vmatpush2.msra.mxu0 0.0
        %439 = vmatprep.subr.mxu0 0.0
        %440 = vmatpush2.msra.mxu0 0.0
        %441 = vmatprep.subr.mxu0 0.0
        %442 = vmatpush2.msra.mxu0 0.0
        %443 = vmatprep.subr.mxu0 0.0
        %444 = vmatpush2.msra.mxu0 0.0
        %445 = vmatprep.subr.mxu0 0.0
        %446 = vmatpush2.msra.mxu0 0.0
        %447 = vmatprep.subr.mxu0 0.0
        %448 = vmatpush2.msra.mxu0 0.0
        %449 = vmatprep.subr.mxu0 0.0
        %450 = vmatpush2.msra.mxu0 0.0
        %451 = vmatprep.subr.mxu0 0.0
        %452 = vmatpush2.msra.mxu0 0.0
        %453 = vmatprep.subr.mxu0 0.0
        %454 = vmatpush2.msra.mxu0 0.0
        %455 = vmatprep.subr.mxu0 0.0
        %456 = vmatpush2.msra.mxu0 0.0
        %457 = vmatprep.subr.mxu0 0.0
        %458 = vmatpush2.msra.mxu0 0.0
        %459 = vmatprep.subr.mxu0 0.0
        %460 = vmatpush2.msra.mxu0 0.0
        %461 = vmatprep.subr.mxu0 0.0
        %462 = vmatpush2.msra.mxu0 0.0
        %463 = vmatprep.mubr.f32.mxu0 0.0
        %464 = vmatmul.mubr.f32.gmra.mxu0 %v394
        %v465 = vpop.f32.mrf.mxu0
        %v466 = vadd.f32 %v312, %v465
        %v467 = vpop.f32.mrf.mxu0
        %468 = vdwg.mxu0
        %v469 = vmul.f32 %v390, %v289
        %v470 = vmul.f32 %v466, %v290
        %v471 = vadd.f32 %v469, %v256
        %v472 = vadd.f32 %v470, %v257
        %473 = vst [vmem:[%s218] sm:$0x3] %v471
        %474 = vst [vmem:[%s218 + $0x2] sm:$0x3] %v472
        %s475 = sand.u32 %s119, 1
        %s476 = scalar_lea.sflag [#allocation3], %s475
        %s477 = sand.u32 %s119, 1
        %s478 = smul.addr %s477, 4
        %s479 = scalar_lea.vmem [#allocation2], %s478
        // Predicated region
        $region33: #{tpu_custom_call.1} parent=31 // pred_check
          %p480 = pneg %p129
        $region34: #{tpu_custom_call.1} parent=31 // pred_check_branch
          %482 = sbr.rel (%p480) target = $region36
        $region35: #{tpu_custom_call.1} parent=31 // pred_region
          %s483 = smul.u32 2, %s21
          %s485 = ssub.s32 64, 64
          %486 = vsyncadd %s476, %s485
          %s487 = sadd.s32 %s22, %s483
          %s488 = smul.addr %s487, 32
          %s489 = scalar_lea.hbm %s3, %s488
          %s490 = sshll.u32 %s479, 4
          %s491 = int_to_ptr.vmem [resolvable:$true] %s490
          %496 = dma.vmem_to_hbm [thread:$0]  %s491, 64, %s489, %s476, 32, 32, 2
        $region36: #{tpu_custom_call.1} parent=31 // pred_fallthru
          _
      $region32: #{tpu_custom_call.1} parent=5 // pred_fallthru
        _
      %p497 = scmp.le.s32.totalorder 2, %s12
      // Predicated region
      $region37: #{tpu_custom_call.1} parent=5 // pred_check
        %p498 = pneg %p497
      $region38: #{tpu_custom_call.1} parent=5 // pred_check_branch
        %500 = sbr.rel (%p498) target = $region40
      $region39: #{tpu_custom_call.1} parent=5 // pred_region
        %s501 = ssub.s32 %s12, 2
        // Predicated region
        $region41: #{tpu_custom_call.1} parent=39 // pred_check
          %p502 = pneg %p135
        $region42: #{tpu_custom_call.1} parent=39 // pred_check_branch
          %504 = sbr.rel (%p502) target = $region44
        $region43: #{tpu_custom_call.1} parent=39 // pred_region
          %s505 = sand.u32 %s120, 1
          %s506 = scalar_lea.sflag [#allocation3], %s505
          %s507 = sand.u32 %s120, 1
          %s508 = smul.addr %s507, 4
          %s509 = scalar_lea.vmem [#allocation2], %s508
          %510 = dma.done %s506, 64
        $region44: #{tpu_custom_call.1} parent=39 // pred_fallthru
          _
      $region40: #{tpu_custom_call.1} parent=5 // pred_fallthru
        _
    $region6: #{tpu_custom_call.1} parent=1 // loop_footer
      %s16 = sadd.s32 1, %s12
    $region7: #{tpu_custom_call.1} parent=1 // loop_footer_branch
      %11 = sbr.rel target = $region3
    $region8: #{tpu_custom_call.1} parent=1 // loop_exit
      _
    %511 = vsyncpa [#allocation3], 1
    %s512 = scalar_lea.sflag [#allocation3], 1
    %513 = vsyncpa %s512, 1

</llo_original>
